<compile_context>
chip_gen: v7x
topology: tpu7x:2x2x1
jax: 0.10.0
libtpu: 0.0.40
codegen_flags: <defaults>
</compile_context>

<pallas_src>
import functools
import math

import jax
import jax.numpy as jnp
from jax import lax
from jax.experimental import pallas as pl
from jax.experimental.pallas import tpu as pltpu


def _round_up(x, m):
    return ((x + m - 1) // m) * m


def _ld_cols(ref, idx, n_cols, full_cols):
    """Load ref[idx] restricted to the first n_cols lanes (static slice)."""
    if n_cols == full_cols:
        return ref[idx]
    return ref[idx, :, pl.ds(0, n_cols)]


# ---------------------------------------------------------------------------
# Fused MLP kernel: runs every layer on a [tm, P] activation tile.
# ---------------------------------------------------------------------------
def _fused_mlp_kernel(*refs, num_mats, skip_layers, negative_slope,
                      apply_softmax, d_in, d_out, n_out_pad, feat_pad):
    if skip_layers:
        x_ref, w_ref, ws_ref, b_ref, o_ref, x0_scr = refs
    else:
        x_ref, w_ref, b_ref, o_ref, x0_scr = refs
        ws_ref = None

    P = feat_pad

    # In-kernel lane pad: build the zero-padded skip source [tm, P] in VMEM.
    # Padded lanes MUST be zeroed every grid step (stale VMEM could hold
    # NaN/Inf bit patterns that would survive the zero-padded weight rows).
    x0_scr[...] = jnp.zeros_like(x0_scr)
    x0_scr[:, pl.ds(0, d_in)] = x_ref[...]

    x = x0_scr[...].astype(jnp.bfloat16)               # [tm, P] bf16 operand
    for l in range(num_mats):                           # statically unrolled
        last = l == num_mats - 1
        n_cols = n_out_pad if last else P
        w_l = _ld_cols(w_ref, l, n_cols, P)             # [P, n_cols] bf16
        y = jnp.dot(x, w_l, preferred_element_type=jnp.float32)
        if l in skip_layers:
            # cat([x, inp]) @ W  ==  x @ W_top + inp @ W_bottom.  Reload the
            # skip source from VMEM scratch (keeps vreg pressure low).
            s = skip_layers.index(l)
            ws_l = _ld_cols(ws_ref, s, n_cols, P)
            y = y + jnp.dot(x0_scr[...].astype(jnp.bfloat16), ws_l,
                            preferred_element_type=jnp.float32)
        y = y + _ld_cols(b_ref, l, n_cols, P)           # (1, n_cols) f32
        if not last:
            if negative_slope == 0.0:                   # ReLU
                y = jnp.maximum(y, 0.0)
            else:                                       # LeakyReLU
                y = jnp.where(y > 0, y, negative_slope * y)
            x = y.astype(jnp.bfloat16)
        else:
            x = y                                       # [tm, n_out_pad] f32

    if apply_softmax:
        # Mask padded lanes (>= d_out) so they contribute nothing.
        col = lax.broadcasted_iota(jnp.int32, x.shape, 1)
        x = jnp.where(col < d_out, x, -jnp.inf)
        m = jnp.max(x, axis=-1, keepdims=True)
        e = jnp.exp(x - m)
        denom = jnp.sum(e, axis=-1, keepdims=True)
        x = e * pl.reciprocal(denom)                    # exact reciprocal

    o_ref[...] = x.astype(o_ref.dtype)


def _fused_mlp_forward(x2d, w_all, ws_all, b_all, *, skip_layers,
                       negative_slope, apply_softmax, d_in, d_out, P):
    """x2d: [M, d_in] f32 (unpadded). Returns [M, d_out] f32."""
    M = x2d.shape[0]
    n_out_pad = _round_up(d_out, 128)

    # Row tiling: big tiles amortize the ~0.35 us per-grid-step overhead, but
    # keep >=2 grid steps when possible so v7x's 2 TensorCores can both work
    # on the single "parallel" axis (no-op on single-TC v5e/v6e).
    M8 = _round_up(max(M, 1), 8)
    if M8 <= 8:
        tm = M8
    else:
        tm = min(1024, _round_up((M8 + 1) // 2, 8))
    M_pad = _round_up(M, tm)
    if M_pad != M:
        x2d = jnp.pad(x2d, ((0, M_pad - M), (0, 0)))    # rows only

    L = w_all.shape[0]
    has_skip = bool(skip_layers)
    S = ws_all.shape[0] if has_skip else 0

    kernel = functools.partial(
        _fused_mlp_kernel,
        num_mats=L,
        skip_layers=tuple(skip_layers),
        negative_slope=negative_slope,
        apply_softmax=apply_softmax,
        d_in=d_in,
        d_out=d_out,
        n_out_pad=n_out_pad,
        feat_pad=P,
    )

    # Parameters are VMEM-resident across the whole grid (constant index_map).
    in_specs = [pl.BlockSpec((tm, d_in), lambda i: (i, 0)),
                pl.BlockSpec((L, P, P), lambda i: (0, 0, 0))]
    args = [x2d, w_all]
    if has_skip:
        in_specs.append(pl.BlockSpec((S, P, P), lambda i: (0, 0, 0)))
        args.append(ws_all)
    in_specs.append(pl.BlockSpec((L, 1, P), lambda i: (0, 0, 0)))
    args.append(b_all)

    # Explicit VMEM budget: resident params (double-buffered by the default
    # pipeline), I/O tiles, skip-source scratch, per-layer temporaries.
    param_bytes = (w_all.size * w_all.dtype.itemsize
                   + (ws_all.size * ws_all.dtype.itemsize if has_skip else 0)
                   + b_all.size * b_all.dtype.itemsize)
    io_bytes = 2 * tm * d_in * 4 + 2 * tm * n_out_pad * 4
    scratch_bytes = tm * P * 4
    interm_bytes = (L + 3) * tm * P * 4
    vmem_needed = 2 * param_bytes + io_bytes + scratch_bytes + interm_bytes
    vmem_limit = int(min(max(2 * vmem_needed, 32 << 20), 64 << 20))

    out = pl.pallas_call(
        kernel,
        out_shape=jax.ShapeDtypeStruct((M_pad, n_out_pad), jnp.float32),
        grid=(M_pad // tm,),
        in_specs=in_specs,
        out_specs=pl.BlockSpec((tm, n_out_pad), lambda i: (i, 0)),
        scratch_shapes=[pltpu.VMEM((tm, P), jnp.float32)],
        compiler_params=pltpu.CompilerParams(
            dimension_semantics=("parallel",),
            vmem_limit_bytes=vmem_limit),
    )(*args)

    return out[:M, :d_out]


# ---------------------------------------------------------------------------
# skip_connection module (parameters built deterministically in-script)
# ---------------------------------------------------------------------------
class SkipConnection:
    def __init__(self, d_in, d_out, width, depth, skip_layer=(), relu=False,
                 key=None):
        dims = [d_in] + [width] * depth + [d_out]
        self.num_layers = len(dims)
        self.skip_layer = list(skip_layer)
        self.negative_slope = 0.0 if relu else 0.01   # torch LeakyReLU default
        self.d_in = d_in
        self.d_out = d_out

        if key is None:
            key = jax.random.PRNGKey(0)

        # Lane-dense padded feature width (covers every layer's fan-in/out).
        P = _round_up(max(dims), 128)
        self.P = P
        L = self.num_layers - 1
        self._skip_tuple = tuple(l for l in range(L) if l in self.skip_layer)

        # TODO(synk): if real trained torch weight_norm checkpoints are ever
        # loaded, fold g * v/||v|| into these dense weights first (at init the
        # reparametrization is numerically the identity).
        w_main, w_skip, b_list = [], [], []
        self._ref_w, self._ref_b = [], []   # unpadded f32 copies (reference)
        for l in range(L):
            fan_in = dims[l] + dims[0] if l in self.skip_layer else dims[l]
            fan_out = dims[l + 1]
            key, kw, kb = jax.random.split(key, 3)
            bound = 1.0 / math.sqrt(fan_in)
            w = jax.random.uniform(kw, (fan_in, fan_out), jnp.float32,
                                   -bound, bound)            # [K, N] (pre-T)
            b = jax.random.uniform(kb, (fan_out,), jnp.float32, -bound, bound)
            self._ref_w.append(w)
            self._ref_b.append(b)

            # main part: rows multiplying the running activation x
            w_x = w[:dims[l]]
            w_main.append(jnp.zeros((P, P), jnp.float32)
                          .at[:dims[l], :fan_out].set(w_x))
            # skip part: rows multiplying the raw network input
            if l in self.skip_layer:
                w_s = w[dims[l]:]
                w_skip.append(jnp.zeros((P, P), jnp.float32)
                              .at[:dims[0], :fan_out].set(w_s))
            b_list.append(jnp.zeros((1, P), jnp.float32)
                          .at[0, :fan_out].set(b))

        # bf16 weights (MXU-native); biases stay f32 (added to f32 accumulator).
        self.w_all = jnp.stack(w_main).astype(jnp.bfloat16)        # [L, P, P]
        self.ws_all = (jnp.stack(w_skip).astype(jnp.bfloat16)
                       if w_skip else None)                         # [S, P, P]
        self.b_all = jnp.stack(b_list)                              # [L, 1, P]

        self._fwd_cache = {}

    # -- jitted forward ----------------------------------------------------
    def _forward_impl(self, inp, w_all, ws_all, b_all, *, softmax):
        B, T, D = inp.shape
        x2d = inp.reshape(B * T, D)                     # no lane pad here
        out2d = _fused_mlp_forward(
            x2d, w_all, ws_all, b_all,
            skip_layers=self._skip_tuple,
            negative_slope=self.negative_slope,
            apply_softmax=softmax,
            d_in=self.d_in,
            d_out=self.d_out,
            P=self.P,
        )
        return out2d.reshape(B, T, self.d_out)

    def __call__(self, inp, softmax=False):
        softmax = bool(softmax)
        fn = self._fwd_cache.get(softmax)
        if fn is None:
            fn = jax.jit(functools.partial(self._forward_impl, softmax=softmax))
            self._fwd_cache[softmax] = fn
        return fn(inp, self.w_all, self.ws_all, self.b_all)

    # -- pure-JAX reference (bf16-matmul matched, for correctness check) ----
    def reference(self, inp, softmax=False):
        B, T, D = inp.shape
        inp2d = inp.reshape(B * T, D)
        x = inp2d
        for l in range(self.num_layers - 1):
            if l in self.skip_layer:
                x = jnp.concatenate([x, inp2d], axis=1)
            w = self._ref_w[l].astype(jnp.bfloat16)
            x = jnp.dot(x.astype(jnp.bfloat16), w,
                        preferred_element_type=jnp.float32) + self._ref_b[l]
            if l < self.num_layers - 2:
                if self.negative_slope == 0.0:
                    x = jnp.maximum(x, 0.0)
                else:
                    x = jnp.where(x > 0, x, self.negative_slope * x)
        out = x.reshape(B, T, -1)
        if softmax:
            out = jax.nn.softmax(out, axis=-1)
        return out


# ---------------------------------------------------------------------------
if __name__ == "__main__":
    key = jax.random.PRNGKey(0)
    k_in, k_params, k_params2 = jax.random.split(key, 3)

    # Small shapes consistent with the module's [B, T, D] contract.
    B, T, D_IN = 2, 8, 4
    D_OUT, WIDTH, DEPTH = 4, 32, 3

    net = SkipConnection(d_in=D_IN, d_out=D_OUT, width=WIDTH, depth=DEPTH,
                         skip_layer=[2], relu=False, key=k_params)
    x = jax.random.normal(k_in, (B, T, D_IN), jnp.float32)

    out = jax.block_until_ready(net(x, softmax=False))
    assert out.shape == (B, T, D_OUT), out.shape
    ref = net.reference(x, softmax=False)
    assert jnp.allclose(out, ref, atol=2e-3, rtol=2e-3), \
        float(jnp.max(jnp.abs(out - ref)))

    out_sm = jax.block_until_ready(net(x, softmax=True))
    ref_sm = net.reference(x, softmax=True)
    assert out_sm.shape == (B, T, D_OUT)
    assert jnp.allclose(out_sm, ref_sm, atol=2e-3), \
        float(jnp.max(jnp.abs(out_sm - ref_sm)))
    assert jnp.allclose(jnp.sum(out_sm, axis=-1), 1.0, atol=1e-3)

    # No-skip / ReLU configuration (exercises the ws-less input path).
    net2 = SkipConnection(d_in=D_IN, d_out=D_OUT, width=WIDTH, depth=2,
                          skip_layer=[], relu=True, key=k_params2)
    out2 = jax.block_until_ready(net2(x, softmax=False))
    ref2 = net2.reference(x, softmax=False)
    assert out2.shape == (B, T, D_OUT)
    assert jnp.allclose(out2, ref2, atol=2e-3, rtol=2e-3), \
        float(jnp.max(jnp.abs(out2 - ref2)))

    print("KERNEL_OK")
</pallas_src>

<mosaic_0001>
module attributes {stable_mosaic.version = 11 : i64} {
  func.func @_fused_mlp_kernel(%arg0: i32, %arg1: memref<8x4xf32, #tpu.memory_space<vmem>>, %arg2: memref<4x128x128xbf16, #tpu.memory_space<vmem>>, %arg3: memref<1x128x128xbf16, #tpu.memory_space<vmem>>, %arg4: memref<4x1x128xf32, #tpu.memory_space<vmem>>, %arg5: memref<8x128xf32, #tpu.memory_space<vmem>>, %arg6: memref<8x128xf32, #tpu.memory_space<vmem>>) attributes {dimension_semantics = [#tpu.dimension_semantics<parallel>], iteration_bounds = array<i64: 2>, scalar_prefetch = 0 : i64, scratch_operands = 1 : i64, tpu.core_type = #tpu.core_type<tc>, window_params = [{transform_indices = @transform_0, window_bounds = array<i64: 8, 4>}, {pipeline_mode = #tpu.pipeline_mode<synchronous>, transform_indices = @transform_1, window_bounds = array<i64: 4, 128, 128>}, {pipeline_mode = #tpu.pipeline_mode<synchronous>, transform_indices = @transform_2, window_bounds = array<i64: 1, 128, 128>}, {pipeline_mode = #tpu.pipeline_mode<synchronous>, transform_indices = @transform_3, window_bounds = array<i64: 4, 1, 128>}, {transform_indices = @transform_4, window_bounds = array<i64: 8, 128>}]} {
    %cst = arith.constant 0.000000e+00 : f32
    %0 = vector.broadcast %cst : f32 to vector<8x128xf32>
    %c0 = arith.constant 0 : index
    %c0_0 = arith.constant 0 : index
    %1 = vector.load %arg6[%c0, %c0_0] : memref<8x128xf32, #tpu.memory_space<vmem>>, vector<8x128xf32>
    tpu.vector_store %arg6[%c0, %c0_0], %0 {strides = array<i32>} : memref<8x128xf32, #tpu.memory_space<vmem>>, vector<8x128xf32>,
    %c0_1 = arith.constant 0 : index
    %c0_2 = arith.constant 0 : index
    %2 = vector.load %arg1[%c0_1, %c0_2] : memref<8x4xf32, #tpu.memory_space<vmem>>, vector<8x4xf32>
    %c0_3 = arith.constant 0 : index
    %c0_4 = arith.constant 0 : index
    %3 = vector.load %arg6[%c0_3, %c0_4] : memref<8x128xf32, #tpu.memory_space<vmem>>, vector<8x4xf32>
    tpu.vector_store %arg6[%c0_3, %c0_4], %2 {strides = array<i32>} : memref<8x128xf32, #tpu.memory_space<vmem>>, vector<8x4xf32>,
    %c0_5 = arith.constant 0 : index
    %c0_6 = arith.constant 0 : index
    %4 = vector.load %arg6[%c0_5, %c0_6] : memref<8x128xf32, #tpu.memory_space<vmem>>, vector<8x128xf32>
    %5 = arith.truncf %4 : vector<8x128xf32> to vector<8x128xbf16>
    %c0_7 = arith.constant 0 : index
    %c0_8 = arith.constant 0 : index
    %c0_9 = arith.constant 0 : index
    %6 = vector.load %arg2[%c0_7, %c0_8, %c0_9] : memref<4x128x128xbf16, #tpu.memory_space<vmem>>, vector<1x128x128xbf16>
    %7 = vector.shape_cast %6 : vector<1x128x128xbf16> to vector<128x128xbf16>
    %cst_10 = arith.constant dense<0.000000e+00> : vector<8x128xf32>
    %8 = tpu.matmul %5, %7, %cst_10 {dimension_numbers = #tpu.dot_dimension_numbers<[1], [0], [0], [1], [0, 0, 1, 1], [], []>} : vector<8x128xbf16>, vector<128x128xbf16>, vector<8x128xf32> -> vector<8x128xf32>
    %c0_11 = arith.constant 0 : index
    %c0_12 = arith.constant 0 : index
    %c0_13 = arith.constant 0 : index
    %9 = vector.load %arg4[%c0_11, %c0_12, %c0_13] : memref<4x1x128xf32, #tpu.memory_space<vmem>>, vector<1x1x128xf32>
    %10 = vector.shape_cast %9 : vector<1x1x128xf32> to vector<1x128xf32>
    %11 = vector.broadcast %10 : vector<1x128xf32> to vector<8x128xf32>
    %12 = arith.addf %8, %11 : vector<8x128xf32>
    %cst_14 = arith.constant 0.000000e+00 : f32
    %13 = vector.broadcast %cst_14 : f32 to vector<8x128xf32>
    %14 = arith.cmpf ogt, %12, %13 : vector<8x128xf32>
    %cst_15 = arith.constant 0.00999999977 : f32
    %15 = vector.broadcast %cst_15 : f32 to vector<8x128xf32>
    %16 = arith.mulf %15, %12 : vector<8x128xf32>
    %17 = arith.select %14, %12, %16 : vector<8x128xi1>, vector<8x128xf32>
    %18 = arith.truncf %17 : vector<8x128xf32> to vector<8x128xbf16>
    %c1 = arith.constant 1 : index
    %c0_16 = arith.constant 0 : index
    %c0_17 = arith.constant 0 : index
    %19 = vector.load %arg2[%c1, %c0_16, %c0_17] : memref<4x128x128xbf16, #tpu.memory_space<vmem>>, vector<1x128x128xbf16>
    %20 = vector.shape_cast %19 : vector<1x128x128xbf16> to vector<128x128xbf16>
    %cst_18 = arith.constant dense<0.000000e+00> : vector<8x128xf32>
    %21 = tpu.matmul %18, %20, %cst_18 {dimension_numbers = #tpu.dot_dimension_numbers<[1], [0], [0], [1], [0, 0, 1, 1], [], []>} : vector<8x128xbf16>, vector<128x128xbf16>, vector<8x128xf32> -> vector<8x128xf32>
    %c1_19 = arith.constant 1 : index
    %c0_20 = arith.constant 0 : index
    %c0_21 = arith.constant 0 : index
    %22 = vector.load %arg4[%c1_19, %c0_20, %c0_21] : memref<4x1x128xf32, #tpu.memory_space<vmem>>, vector<1x1x128xf32>
    %23 = vector.shape_cast %22 : vector<1x1x128xf32> to vector<1x128xf32>
    %24 = vector.broadcast %23 : vector<1x128xf32> to vector<8x128xf32>
    %25 = arith.addf %21, %24 : vector<8x128xf32>
    %cst_22 = arith.constant 0.000000e+00 : f32
    %26 = vector.broadcast %cst_22 : f32 to vector<8x128xf32>
    %27 = arith.cmpf ogt, %25, %26 : vector<8x128xf32>
    %cst_23 = arith.constant 0.00999999977 : f32
    %28 = vector.broadcast %cst_23 : f32 to vector<8x128xf32>
    %29 = arith.mulf %28, %25 : vector<8x128xf32>
    %30 = arith.select %27, %25, %29 : vector<8x128xi1>, vector<8x128xf32>
    %31 = arith.truncf %30 : vector<8x128xf32> to vector<8x128xbf16>
    %c2 = arith.constant 2 : index
    %c0_24 = arith.constant 0 : index
    %c0_25 = arith.constant 0 : index
    %32 = vector.load %arg2[%c2, %c0_24, %c0_25] : memref<4x128x128xbf16, #tpu.memory_space<vmem>>, vector<1x128x128xbf16>
    %33 = vector.shape_cast %32 : vector<1x128x128xbf16> to vector<128x128xbf16>
    %cst_26 = arith.constant dense<0.000000e+00> : vector<8x128xf32>
    %34 = tpu.matmul %31, %33, %cst_26 {dimension_numbers = #tpu.dot_dimension_numbers<[1], [0], [0], [1], [0, 0, 1, 1], [], []>} : vector<8x128xbf16>, vector<128x128xbf16>, vector<8x128xf32> -> vector<8x128xf32>
    %c0_27 = arith.constant 0 : index
    %c0_28 = arith.constant 0 : index
    %c0_29 = arith.constant 0 : index
    %35 = vector.load %arg3[%c0_27, %c0_28, %c0_29] : memref<1x128x128xbf16, #tpu.memory_space<vmem>>, vector<1x128x128xbf16>
    %36 = vector.shape_cast %35 : vector<1x128x128xbf16> to vector<128x128xbf16>
    %c0_30 = arith.constant 0 : index
    %c0_31 = arith.constant 0 : index
    %37 = vector.load %arg6[%c0_30, %c0_31] : memref<8x128xf32, #tpu.memory_space<vmem>>, vector<8x128xf32>
    %38 = arith.truncf %37 : vector<8x128xf32> to vector<8x128xbf16>
    %cst_32 = arith.constant dense<0.000000e+00> : vector<8x128xf32>
    %39 = tpu.matmul %38, %36, %cst_32 {dimension_numbers = #tpu.dot_dimension_numbers<[1], [0], [0], [1], [0, 0, 1, 1], [], []>} : vector<8x128xbf16>, vector<128x128xbf16>, vector<8x128xf32> -> vector<8x128xf32>
    %40 = arith.addf %34, %39 : vector<8x128xf32>
    %c2_33 = arith.constant 2 : index
    %c0_34 = arith.constant 0 : index
    %c0_35 = arith.constant 0 : index
    %41 = vector.load %arg4[%c2_33, %c0_34, %c0_35] : memref<4x1x128xf32, #tpu.memory_space<vmem>>, vector<1x1x128xf32>
    %42 = vector.shape_cast %41 : vector<1x1x128xf32> to vector<1x128xf32>
    %43 = vector.broadcast %42 : vector<1x128xf32> to vector<8x128xf32>
    %44 = arith.addf %40, %43 : vector<8x128xf32>
    %cst_36 = arith.constant 0.000000e+00 : f32
    %45 = vector.broadcast %cst_36 : f32 to vector<8x128xf32>
    %46 = arith.cmpf ogt, %44, %45 : vector<8x128xf32>
    %cst_37 = arith.constant 0.00999999977 : f32
    %47 = vector.broadcast %cst_37 : f32 to vector<8x128xf32>
    %48 = arith.mulf %47, %44 : vector<8x128xf32>
    %49 = arith.select %46, %44, %48 : vector<8x128xi1>, vector<8x128xf32>
    %50 = arith.truncf %49 : vector<8x128xf32> to vector<8x128xbf16>
    %c3 = arith.constant 3 : index
    %c0_38 = arith.constant 0 : index
    %c0_39 = arith.constant 0 : index
    %51 = vector.load %arg2[%c3, %c0_38, %c0_39] : memref<4x128x128xbf16, #tpu.memory_space<vmem>>, vector<1x128x128xbf16>
    %52 = vector.shape_cast %51 : vector<1x128x128xbf16> to vector<128x128xbf16>
    %cst_40 = arith.constant dense<0.000000e+00> : vector<8x128xf32>
    %53 = tpu.matmul %50, %52, %cst_40 {dimension_numbers = #tpu.dot_dimension_numbers<[1], [0], [0], [1], [0, 0, 1, 1], [], []>} : vector<8x128xbf16>, vector<128x128xbf16>, vector<8x128xf32> -> vector<8x128xf32>
    %c3_41 = arith.constant 3 : index
    %c0_42 = arith.constant 0 : index
    %c0_43 = arith.constant 0 : index
    %54 = vector.load %arg4[%c3_41, %c0_42, %c0_43] : memref<4x1x128xf32, #tpu.memory_space<vmem>>, vector<1x1x128xf32>
    %55 = vector.shape_cast %54 : vector<1x1x128xf32> to vector<1x128xf32>
    %56 = vector.broadcast %55 : vector<1x128xf32> to vector<8x128xf32>
    %57 = arith.addf %53, %56 : vector<8x128xf32>
    %c0_44 = arith.constant 0 : index
    %c0_45 = arith.constant 0 : index
    %58 = vector.load %arg5[%c0_44, %c0_45] : memref<8x128xf32, #tpu.memory_space<vmem>>, vector<8x128xf32>
    tpu.vector_store %arg5[%c0_44, %c0_45], %57 {strides = array<i32>} : memref<8x128xf32, #tpu.memory_space<vmem>>, vector<8x128xf32>,
    return
  }
  func.func @transform_0(%arg0: i32) -> (i32, i32) {
    %c0_i32 = arith.constant 0 : i32
    %c0_i32_0 = arith.constant 0 : i32
    return %arg0, %c0_i32 : i32, i32
  }
  func.func @transform_1(%arg0: i32) -> (i32, i32, i32) {
    %c0_i32 = arith.constant 0 : i32
    %c0_i32_0 = arith.constant 0 : i32
    %c0_i32_1 = arith.constant 0 : i32
    %c0_i32_2 = arith.constant 0 : i32
    return %c0_i32, %c0_i32_0, %c0_i32_1 : i32, i32, i32
  }
  func.func @transform_2(%arg0: i32) -> (i32, i32, i32) {
    %c0_i32 = arith.constant 0 : i32
    %c0_i32_0 = arith.constant 0 : i32
    %c0_i32_1 = arith.constant 0 : i32
    %c0_i32_2 = arith.constant 0 : i32
    return %c0_i32, %c0_i32_0, %c0_i32_1 : i32, i32, i32
  }
  func.func @transform_3(%arg0: i32) -> (i32, i32, i32) {
    %c0_i32 = arith.constant 0 : i32
    %c0_i32_0 = arith.constant 0 : i32
    %c0_i32_1 = arith.constant 0 : i32
    %c0_i32_2 = arith.constant 0 : i32
    return %c0_i32, %c0_i32_0, %c0_i32_1 : i32, i32, i32
  }
  func.func @transform_4(%arg0: i32) -> (i32, i32) {
    %c0_i32 = arith.constant 0 : i32
    %c0_i32_0 = arith.constant 0 : i32
    return %arg0, %c0_i32 : i32, i32
  }
}

</mosaic_0001>

<llo_original>
// kernel: _forward_impl.1
$region0: #{_forward_impl.1}
  #allocation0 [shape = 'u32[]', space=smem, size = 0x4, offset = 0x4, fixed_abs, tag = 'smem constant byte address 0x4 - core index']
  #allocation1 [shape = 'u32[144,128]{1,0:T(1,128)}', space=vmem, size = 0x12000, scoped, tag = 'internal scratch']
  #allocation2 [shape = 'f32[8,128]{1,0:T(8,128)}', space=vmem, size = 0x1000, scoped, tag = 'scratch operand']
  %s0 = inlined_call_operand.vmem [shape: f32[16,4], index: 0, kind: input, shape index: {}]
  %s1 = inlined_call_operand.hbm [shape: bf16[4,128,128], index: 1, kind: input, shape index: {}]
  %s2 = inlined_call_operand.hbm [shape: bf16[1,128,128], index: 2, kind: input, shape index: {}]
  %s3 = inlined_call_operand.vmem [shape: f32[4,1,128], index: 3, kind: input, shape index: {}]
  %s4 = inlined_call_operand.vmem [shape: f32[16,128], index: 4, kind: output, shape index: {}]
  %s5 = sld [smem:[#allocation0]]
  $region57: #{_forward_impl.1} parent=0
    _
  %s7 = ssub.s32 1, %s5
  %s8 = scalar_select 0, %s7, %s5
  $region1: #{_forward_impl.1} parent=0
    #allocation3 [shape = 'u8[131072]{0}', space=vmem, size = 0x20000, scoped, tag = 'input window, operand 1, single buffered']
    #allocation4 [shape = 's32[2]{0}', space=sflag, size = 0x8, scoped, tag = 'scoped memory for _forward_impl.1']
    #allocation5 [shape = 'u8[32768]{0}', space=vmem, size = 0x8000, scoped, tag = 'input window, operand 2, single buffered']
    #allocation6 [shape = 's32[1]{0}', space=sflag, size = 0x4, scoped, tag = 'scoped memory for _forward_impl.1']
    %9 = vsyncpa [#allocation4], 0
    %10 = vsyncpa [#allocation6], 0
    loop: start=0, step=1, limit=4
    $region2: #{_forward_impl.1} parent=1 // loop_pre_header
      _
    $region3: #{_forward_impl.1} parent=1 // loop_header
      %s12 = sphi 0, %s16
      %p13 = scmp.ge.s32.totalorder %s12, 4
      %s22 = sphi 0, %s24
      %s25 = sphi 0, %s22
      %s26 = sphi 0, %s25
      %s42 = sphi 0, %s26
      %s46 = sphi 0, %s46
      %s48 = sphi 0, %s46
      %s49 = sphi 0, %s48
      %s63 = sphi 0, %s49
      %s67 = sphi 0, %s67
      %s69 = sphi 0, %s67
      %s70 = sphi 0, %s69
      %s84 = sphi 0, %s70
      %s88 = sphi 0, %s88
      %s90 = sphi 0, %s88
      %s91 = sphi 0, %s90
      %s105 = sphi 0, %s91
      %s111 = sphi 0, %s113
      %s114 = sphi 0, %s111
      %s115 = sphi 0, %s114
      %s131 = sphi 0, %s115
    $region4: #{_forward_impl.1} parent=1 // loop_header_branch
      %15 = sbr.rel (%p13) target = $region8
    $region5: #{_forward_impl.1} parent=1 // loop_body
      %s17 = ssub.s32 %s12, 1
      %s18 = ssub.s32 %s12, 2
      %s19 = sadd.s32 %s12, 1
      %s20 = ssub.s32 %s12, %s19
      %p21 = scmp.eq.s32.totalorder %s20, 0
      %s23 = sadd.s32 %s22, 1
      %s24 = scalar_select %p21, %s22, %s23
      %p27 = pneg %p21
      %p28 = scmp.eq.s32.totalorder %s12, 1
      %p29 = por %p27, %p28
      %p30 = scmp.ne.s32.totalorder %s22, %s25
      %p31 = scmp.eq.s32.totalorder %s12, 0
      %p32 = por %p30, %p31
      %p33 = scmp.ne.s32.totalorder %s22, %s25
      %p34 = scmp.eq.s32.totalorder %s17, 1
      %p35 = por %p33, %p34
      %p36 = scmp.ne.s32.totalorder %s25, %s26
      %p37 = scmp.eq.s32.totalorder %s17, 0
      %p38 = por %p36, %p37
      %p39 = scmp.ne.s32.totalorder %s25, %s26
      %p40 = scmp.eq.s32.totalorder %s18, 1
      %p41 = por %p39, %p40
      %p43 = scmp.ne.s32.totalorder %s26, %s42
      %p44 = scmp.eq.s32.totalorder %s18, 0
      %p45 = por %p43, %p44
      %s47 = sadd.s32 %s46, 1
      %p50 = scmp.eq.s32.totalorder %s12, 1
      %p51 = scmp.ne.s32.totalorder %s46, %s48
      %p52 = scmp.eq.s32.totalorder %s12, 0
      %p53 = por %p51, %p52
      %p54 = scmp.ne.s32.totalorder %s46, %s48
      %p55 = scmp.eq.s32.totalorder %s17, 1
      %p56 = por %p54, %p55
      %p57 = scmp.ne.s32.totalorder %s48, %s49
      %p58 = scmp.eq.s32.totalorder %s17, 0
      %p59 = por %p57, %p58
      %p60 = scmp.ne.s32.totalorder %s48, %s49
      %p61 = scmp.eq.s32.totalorder %s18, 1
      %p62 = por %p60, %p61
      %p64 = scmp.ne.s32.totalorder %s49, %s63
      %p65 = scmp.eq.s32.totalorder %s18, 0
      %p66 = por %p64, %p65
      %s68 = sadd.s32 %s67, 1
      %p71 = scmp.eq.s32.totalorder %s12, 1
      %p72 = scmp.ne.s32.totalorder %s67, %s69
      %p73 = scmp.eq.s32.totalorder %s12, 0
      %p74 = por %p72, %p73
      %p75 = scmp.ne.s32.totalorder %s67, %s69
      %p76 = scmp.eq.s32.totalorder %s17, 1
      %p77 = por %p75, %p76
      %p78 = scmp.ne.s32.totalorder %s69, %s70
      %p79 = scmp.eq.s32.totalorder %s17, 0
      %p80 = por %p78, %p79
      %p81 = scmp.ne.s32.totalorder %s69, %s70
      %p82 = scmp.eq.s32.totalorder %s18, 1
      %p83 = por %p81, %p82
      %p85 = scmp.ne.s32.totalorder %s70, %s84
      %p86 = scmp.eq.s32.totalorder %s18, 0
      %p87 = por %p85, %p86
      %s89 = sadd.s32 %s88, 1
      %p92 = scmp.eq.s32.totalorder %s12, 1
      %p93 = scmp.ne.s32.totalorder %s88, %s90
      %p94 = scmp.eq.s32.totalorder %s12, 0
      %p95 = por %p93, %p94
      %p96 = scmp.ne.s32.totalorder %s88, %s90
      %p97 = scmp.eq.s32.totalorder %s17, 1
      %p98 = por %p96, %p97
      %p99 = scmp.ne.s32.totalorder %s90, %s91
      %p100 = scmp.eq.s32.totalorder %s17, 0
      %p101 = por %p99, %p100
      %p102 = scmp.ne.s32.totalorder %s90, %s91
      %p103 = scmp.eq.s32.totalorder %s18, 1
      %p104 = por %p102, %p103
      %p106 = scmp.ne.s32.totalorder %s91, %s105
      %p107 = scmp.eq.s32.totalorder %s18, 0
      %p108 = por %p106, %p107
      %s109 = ssub.s32 %s12, %s19
      %p110 = scmp.eq.s32.totalorder %s109, 0
      %s112 = sadd.s32 %s111, 1
      %s113 = scalar_select %p110, %s111, %s112
      %p116 = pneg %p110
      %p117 = scmp.eq.s32.totalorder %s12, 1
      %p118 = por %p116, %p117
      %p119 = scmp.ne.s32.totalorder %s111, %s114
      %p120 = scmp.eq.s32.totalorder %s12, 0
      %p121 = por %p119, %p120
      %p122 = scmp.ne.s32.totalorder %s111, %s114
      %p123 = scmp.eq.s32.totalorder %s17, 1
      %p124 = por %p122, %p123
      %p125 = scmp.ne.s32.totalorder %s114, %s115
      %p126 = scmp.eq.s32.totalorder %s17, 0
      %p127 = por %p125, %p126
      %p128 = scmp.ne.s32.totalorder %s114, %s115
      %p129 = scmp.eq.s32.totalorder %s18, 1
      %p130 = por %p128, %p129
      %p132 = scmp.ne.s32.totalorder %s115, %s131
      %p133 = scmp.eq.s32.totalorder %s18, 0
      %p134 = por %p132, %p133
      %p135 = scmp.le.s32.totalorder 1, %s12
      %p136 = scmp.lt.s32.totalorder %s12, 3
      %p137 = pnand %p135, %p136
      %p138 = pneg %p137
      // Predicated region
      $region9: #{_forward_impl.1} parent=5 // pred_check
        _
      $region10: #{_forward_impl.1} parent=5 // pred_check_branch
        %140 = sbr.rel (%p137) target = $region12
      $region11: #{_forward_impl.1} parent=5 // pred_region
        %s141 = ssub.s32 %s12, 1
        // Predicated region
        $region13: #{_forward_impl.1} parent=11 // pred_check
          %p142 = pneg %p59
        $region14: #{_forward_impl.1} parent=11 // pred_check_branch
          %144 = sbr.rel (%p142) target = $region16
        $region15: #{_forward_impl.1} parent=11 // pred_region
          %s146 = ssub.s32 4096, 4096
          %147 = vsyncadd [#allocation4], %s146
          %s148 = sshll.u32 [#allocation3], 4
          %s149 = int_to_ptr.vmem [resolvable:$true] %s148
          %154 = dma.hbm_to_vmem [thread:$0]  %s1, 4096, %s149, [#allocation4], 64, 64, 4
        $region16: #{_forward_impl.1} parent=11 // pred_fallthru
          _
        // Predicated region
        $region17: #{_forward_impl.1} parent=11 // pred_check
          %p155 = pneg %p80
        $region18: #{_forward_impl.1} parent=11 // pred_check_branch
          %157 = sbr.rel (%p155) target = $region20
        $region19: #{_forward_impl.1} parent=11 // pred_region
          %s159 = ssub.s32 1024, 1024
          %160 = vsyncadd [#allocation6], %s159
          %s161 = sshll.u32 [#allocation5], 4
          %s162 = int_to_ptr.vmem [resolvable:$true] %s161
          %167 = dma.hbm_to_vmem [thread:$0]  %s2, 1024, %s162, [#allocation6], 64, 64, 4
        $region20: #{_forward_impl.1} parent=11 // pred_fallthru
          _
        // Predicated region
        $region21: #{_forward_impl.1} parent=11 // pred_check
          %p168 = pneg %p101
        $region22: #{_forward_impl.1} parent=11 // pred_check_branch
          %170 = sbr.rel (%p168) target = $region24
        $region23: #{_forward_impl.1} parent=11 // pred_region
          _
        $region24: #{_forward_impl.1} parent=11 // pred_fallthru
          _
      $region12: #{_forward_impl.1} parent=5 // pred_fallthru
        _
      %p171 = scmp.lt.s32.totalorder %s12, 2
      // Predicated region
      $region25: #{_forward_impl.1} parent=5 // pred_check
        %p172 = pneg %p171
      $region26: #{_forward_impl.1} parent=5 // pred_check_branch
        %174 = sbr.rel (%p172) target = $region28
      $region27: #{_forward_impl.1} parent=5 // pred_region
        // Predicated region
        $region29: #{_forward_impl.1} parent=27 // pred_check
          %p175 = pneg %p32
        $region30: #{_forward_impl.1} parent=27 // pred_check_branch
          %177 = sbr.rel (%p175) target = $region32
        $region31: #{_forward_impl.1} parent=27 // pred_region
          %p178 = scmp.lt.s32.totalorder %s12, 1
          %s179 = scalar_select %p178, %s12, 1
          %s180 = smul.addr %s179, 8
          %s181 = scalar_lea.vmem %s0, %s180
        $region32: #{_forward_impl.1} parent=27 // pred_fallthru
          _
      $region28: #{_forward_impl.1} parent=5 // pred_fallthru
        _
      %p182 = scmp.le.s32.totalorder 1, %s12
      %p183 = scmp.lt.s32.totalorder %s12, 3
      %p184 = pnand %p182, %p183
      %p185 = pneg %p184
      // Predicated region
      $region33: #{_forward_impl.1} parent=5 // pred_check
        _
      $region34: #{_forward_impl.1} parent=5 // pred_check_branch
        %187 = sbr.rel (%p184) target = $region36
      $region35: #{_forward_impl.1} parent=5 // pred_region
        %s188 = ssub.s32 %s12, 1
        // Predicated region
        $region37: #{_forward_impl.1} parent=35 // pred_check
          %p189 = pneg %p59
        $region38: #{_forward_impl.1} parent=35 // pred_check_branch
          %191 = sbr.rel (%p189) target = $region40
        $region39: #{_forward_impl.1} parent=35 // pred_region
          %192 = dma.done [#allocation4], 4096
        $region40: #{_forward_impl.1} parent=35 // pred_fallthru
          _
        // Predicated region
        $region41: #{_forward_impl.1} parent=35 // pred_check
          %p193 = pneg %p80
        $region42: #{_forward_impl.1} parent=35 // pred_check_branch
          %195 = sbr.rel (%p193) target = $region44
        $region43: #{_forward_impl.1} parent=35 // pred_region
          %196 = dma.done [#allocation6], 1024
        $region44: #{_forward_impl.1} parent=35 // pred_fallthru
          _
        %p197 = scmp.lt.s32.totalorder %s17, 1
        %s198 = scalar_select %p197, %s17, 1
        %s199 = smul.addr %s198, 8
        %s200 = scalar_lea.vmem %s0, %s199
        %p201 = pneg %p38
        %p202 = pneg %p35
        %p203 = pneg %p59
        %p204 = pneg %p56
        %p205 = pneg %p80
        %p206 = pneg %p77
        %p207 = pneg %p101
        %p208 = pneg %p98
        %p209 = pneg %p127
        %p210 = pneg %p124
        %p211 = scmp.lt.s32.totalorder %s17, 1
        %s212 = scalar_select %p211, %s17, 1
        %s213 = smul.addr %s212, 8
        %s214 = scalar_lea.vmem %s4, %s213
        %p215 = scmp.lt.s32.totalorder %s17, 1
        %s216 = scalar_select %p215, %s17, 1
        %s217 = smul.addr %s216, 8
        %s218 = scalar_lea.vmem %s0, %s217
        %p219 = scmp.lt.s32.totalorder %s17, 1
        %s220 = scalar_select %p219, %s17, 1
        %s221 = smul.addr %s220, 8
        %s222 = scalar_lea.vmem %s4, %s221
        %224 = vst [vmem:[#allocation2] sm:$0xff] 0.0
        %v225 = vld [vmem:[%s218] sm:$0xff]
        %vm226 = vcmask 31744
        %227 = vst.msk [vmem:[#allocation2] sm:$0xff] %vm226, %v225
        %v228 = vld [vmem:[#allocation2] sm:$0xff]
        %v229 = vpack.c.bf16 %v228, %v228
        %v230 = vld [vmem:[#allocation3] sm:$0xf]
        %v231 = vld [vmem:[#allocation3 + $0x4] sm:$0xf]
        %v232 = vld [vmem:[#allocation3 + $0x8] sm:$0xf]
        %v233 = vld [vmem:[#allocation3 + $0xc] sm:$0xf]
        %v234 = vld [vmem:[#allocation3 + $0x10] sm:$0xf]
        %v235 = vld [vmem:[#allocation3 + $0x14] sm:$0xf]
        %v236 = vld [vmem:[#allocation3 + $0x18] sm:$0xf]
        %v237 = vld [vmem:[#allocation3 + $0x1c] sm:$0xf]
        %v238 = vld [vmem:[#allocation3 + $0x20] sm:$0xf]
        %v239 = vld [vmem:[#allocation3 + $0x24] sm:$0xf]
        %v240 = vld [vmem:[#allocation3 + $0x28] sm:$0xf]
        %v241 = vld [vmem:[#allocation3 + $0x2c] sm:$0xf]
        %v242 = vld [vmem:[#allocation3 + $0x30] sm:$0xf]
        %v243 = vld [vmem:[#allocation3 + $0x34] sm:$0xf]
        %v244 = vld [vmem:[#allocation3 + $0x38] sm:$0xf]
        %v245 = vld [vmem:[#allocation3 + $0x3c] sm:$0xf]
        %v246 = vld [vmem:[%s3] sm:$0x1]
        %v248 = vlaneseq
        %v249 = vshrl.u32 %v248, 7
        %v250 = vsub.s32 0, %v249
        %v251 = vrot.slane %v246, %v250
        %v269 = vunpack.c.l.b16 %v230
        %v270 = vunpack.c.l.b16 %v231
        %v271 = vunpack.c.l.b16 %v232
        %v272 = vunpack.c.l.b16 %v233
        %v273 = vunpack.c.l.b16 %v234
        %v274 = vunpack.c.l.b16 %v235
        %v275 = vunpack.c.l.b16 %v236
        %v276 = vunpack.c.l.b16 %v237
        %v277 = vunpack.c.l.b16 %v238
        %v278 = vunpack.c.l.b16 %v239
        %v279 = vunpack.c.l.b16 %v240
        %v280 = vunpack.c.l.b16 %v241
        %v281 = vunpack.c.l.b16 %v242
        %v282 = vunpack.c.l.b16 %v243
        %v283 = vunpack.c.l.b16 %v244
        %v284 = vunpack.c.l.b16 %v245
        %v285 = vpack.c.b16 %v270, %v269
        %v286 = vpack.c.b16 %v272, %v271
        %v287 = vpack.c.b16 %v274, %v273
        %v288 = vpack.c.b16 %v276, %v275
        %v289 = vpack.c.b16 %v278, %v277
        %v290 = vpack.c.b16 %v280, %v279
        %v291 = vpack.c.b16 %v282, %v281
        %v292 = vpack.c.b16 %v284, %v283
        %301 = vmatprep.subr.bf16.mxu0 0
        %302 = vmatpush1.bf16.msra.mxu0 %v285
        %303 = vmatprep.subr.bf16.mxu0 0
        %304 = vmatpush1.bf16.msra.mxu0 %v286
        %305 = vmatprep.subr.bf16.mxu0 0
        %306 = vmatpush1.bf16.msra.mxu0 %v287
        %307 = vmatprep.subr.bf16.mxu0 0
        %308 = vmatpush1.bf16.msra.mxu0 %v288
        %309 = vmatprep.subr.bf16.mxu0 0
        %310 = vmatpush1.bf16.msra.mxu0 %v289
        %311 = vmatprep.subr.bf16.mxu0 0
        %312 = vmatpush1.bf16.msra.mxu0 %v290
        %313 = vmatprep.subr.bf16.mxu0 0
        %314 = vmatpush1.bf16.msra.mxu0 %v291
        %315 = vmatprep.subr.bf16.mxu0 0
        %316 = vmatpush1.bf16.msra.mxu0 %v292
        %317 = vmatprep.subr.bf16.mxu0 0
        %318 = vmatpush1.bf16.msra.mxu0 0
        %319 = vmatprep.subr.bf16.mxu0 0
        %320 = vmatpush1.bf16.msra.mxu0 0
        %321 = vmatprep.subr.bf16.mxu0 0
        %322 = vmatpush1.bf16.msra.mxu0 0
        %323 = vmatprep.subr.bf16.mxu0 0
        %324 = vmatpush1.bf16.msra.mxu0 0
        %325 = vmatprep.subr.bf16.mxu0 0
        %326 = vmatpush1.bf16.msra.mxu0 0
        %327 = vmatprep.subr.bf16.mxu0 0
        %328 = vmatpush1.bf16.msra.mxu0 0
        %329 = vmatprep.subr.bf16.mxu0 0
        %330 = vmatpush1.bf16.msra.mxu0 0
        %331 = vmatprep.subr.bf16.mxu0 0
        %332 = vmatpush1.bf16.msra.mxu0 0
        %333 = vmatprep.mubr.bf16.mxu0 0
        %334 = vmatmul.mubr.bf16.gmra.mrb[0].mxu0 %v229
        %v335 = vpop.f32.mrb[0].mxu0
        %v336 = vadd.f32 %v251, %v335
        %v337 = vpop.f32.mrb[0].mxu0
        %v338 = vpop.f32.mrb[0].mxu0
        %v339 = vpop.f32.mrb[0].mxu0
        %340 = vdwg.mxu0
        %vm341 = vcmp.gt.f32.partialorder %v336, 0.0
        %v342 = vmul.f32 %v336, 0.01
        %v343 = vsel %vm341, %v336, %v342
        %v344 = vpack.c.bf16 %v343, %v343
        %s345 = scalar_lea.vmem [#allocation3], 64
        %v346 = vld [vmem:[%s345] sm:$0xf]
        %v347 = vld [vmem:[%s345 + $0x4] sm:$0xf]
        %v348 = vld [vmem:[%s345 + $0x8] sm:$0xf]
        %v349 = vld [vmem:[%s345 + $0xc] sm:$0xf]
        %v350 = vld [vmem:[%s345 + $0x10] sm:$0xf]
        %v351 = vld [vmem:[%s345 + $0x14] sm:$0xf]
        %v352 = vld [vmem:[%s345 + $0x18] sm:$0xf]
        %v353 = vld [vmem:[%s345 + $0x1c] sm:$0xf]
        %v354 = vld [vmem:[%s345 + $0x20] sm:$0xf]
        %v355 = vld [vmem:[%s345 + $0x24] sm:$0xf]
        %v356 = vld [vmem:[%s345 + $0x28] sm:$0xf]
        %v357 = vld [vmem:[%s345 + $0x2c] sm:$0xf]
        %v358 = vld [vmem:[%s345 + $0x30] sm:$0xf]
        %v359 = vld [vmem:[%s345 + $0x34] sm:$0xf]
        %v360 = vld [vmem:[%s345 + $0x38] sm:$0xf]
        %v361 = vld [vmem:[%s345 + $0x3c] sm:$0xf]
        %s362 = scalar_lea.vmem %s3, 1
        %v363 = vld [vmem:[%s362] sm:$0x1]
        %v365 = vlaneseq
        %v366 = vshrl.u32 %v365, 7
        %v367 = vsub.s32 0, %v366
        %v368 = vrot.slane %v363, %v367
        %v386 = vunpack.c.l.b16 %v346
        %v387 = vunpack.c.l.b16 %v347
        %v388 = vunpack.c.l.b16 %v348
        %v389 = vunpack.c.l.b16 %v349
        %v390 = vunpack.c.l.b16 %v350
        %v391 = vunpack.c.l.b16 %v351
        %v392 = vunpack.c.l.b16 %v352
        %v393 = vunpack.c.l.b16 %v353
        %v394 = vunpack.c.l.b16 %v354
        %v395 = vunpack.c.l.b16 %v355
        %v396 = vunpack.c.l.b16 %v356
        %v397 = vunpack.c.l.b16 %v357
        %v398 = vunpack.c.l.b16 %v358
        %v399 = vunpack.c.l.b16 %v359
        %v400 = vunpack.c.l.b16 %v360
        %v401 = vunpack.c.l.b16 %v361
        %v402 = vpack.c.b16 %v387, %v386
        %v403 = vpack.c.b16 %v389, %v388
        %v404 = vpack.c.b16 %v391, %v390
        %v405 = vpack.c.b16 %v393, %v392
        %v406 = vpack.c.b16 %v395, %v394
        %v407 = vpack.c.b16 %v397, %v396
        %v408 = vpack.c.b16 %v399, %v398
        %v409 = vpack.c.b16 %v401, %v400
        %418 = vmatprep.subr.bf16.mxu0 0
        %419 = vmatpush1.bf16.msra.mxu0 %v402
        %420 = vmatprep.subr.bf16.mxu0 0
        %421 = vmatpush1.bf16.msra.mxu0 %v403
        %422 = vmatprep.subr.bf16.mxu0 0
        %423 = vmatpush1.bf16.msra.mxu0 %v404
        %424 = vmatprep.subr.bf16.mxu0 0
        %425 = vmatpush1.bf16.msra.mxu0 %v405
        %426 = vmatprep.subr.bf16.mxu0 0
        %427 = vmatpush1.bf16.msra.mxu0 %v406
        %428 = vmatprep.subr.bf16.mxu0 0
        %429 = vmatpush1.bf16.msra.mxu0 %v407
        %430 = vmatprep.subr.bf16.mxu0 0
        %431 = vmatpush1.bf16.msra.mxu0 %v408
        %432 = vmatprep.subr.bf16.mxu0 0
        %433 = vmatpush1.bf16.msra.mxu0 %v409
        %434 = vmatprep.subr.bf16.mxu0 0
        %435 = vmatpush1.bf16.msra.mxu0 0
        %436 = vmatprep.subr.bf16.mxu0 0
        %437 = vmatpush1.bf16.msra.mxu0 0
        %438 = vmatprep.subr.bf16.mxu0 0
        %439 = vmatpush1.bf16.msra.mxu0 0
        %440 = vmatprep.subr.bf16.mxu0 0
        %441 = vmatpush1.bf16.msra.mxu0 0
        %442 = vmatprep.subr.bf16.mxu0 0
        %443 = vmatpush1.bf16.msra.mxu0 0
        %444 = vmatprep.subr.bf16.mxu0 0
        %445 = vmatpush1.bf16.msra.mxu0 0
        %446 = vmatprep.subr.bf16.mxu0 0
        %447 = vmatpush1.bf16.msra.mxu0 0
        %448 = vmatprep.subr.bf16.mxu0 0
        %449 = vmatpush1.bf16.msra.mxu0 0
        %450 = vmatprep.mubr.bf16.mxu0 0
        %451 = vmatmul.mubr.bf16.gmra.mrb[0].mxu0 %v344
        %v452 = vpop.f32.mrb[0].mxu0
        %v453 = vadd.f32 %v368, %v452
        %v454 = vpop.f32.mrb[0].mxu0
        %v455 = vpop.f32.mrb[0].mxu0
        %v456 = vpop.f32.mrb[0].mxu0
        %457 = vdwg.mxu0
        %vm458 = vcmp.gt.f32.partialorder %v453, 0.0
        %v459 = vmul.f32 %v453, 0.01
        %v460 = vsel %vm458, %v453, %v459
        %v461 = vpack.c.bf16 %v460, %v460
        %s462 = scalar_lea.vmem [#allocation3], 128
        %v463 = vld [vmem:[%s462] sm:$0xf]
        %v464 = vld [vmem:[%s462 + $0x4] sm:$0xf]
        %v465 = vld [vmem:[%s462 + $0x8] sm:$0xf]
        %v466 = vld [vmem:[%s462 + $0xc] sm:$0xf]
        %v467 = vld [vmem:[%s462 + $0x10] sm:$0xf]
        %v468 = vld [vmem:[%s462 + $0x14] sm:$0xf]
        %v469 = vld [vmem:[%s462 + $0x18] sm:$0xf]
        %v470 = vld [vmem:[%s462 + $0x1c] sm:$0xf]
        %v471 = vld [vmem:[%s462 + $0x20] sm:$0xf]
        %v472 = vld [vmem:[%s462 + $0x24] sm:$0xf]
        %v473 = vld [vmem:[%s462 + $0x28] sm:$0xf]
        %v474 = vld [vmem:[%s462 + $0x2c] sm:$0xf]
        %v475 = vld [vmem:[%s462 + $0x30] sm:$0xf]
        %v476 = vld [vmem:[%s462 + $0x34] sm:$0xf]
        %v477 = vld [vmem:[%s462 + $0x38] sm:$0xf]
        %v478 = vld [vmem:[%s462 + $0x3c] sm:$0xf]
        %v479 = vld [vmem:[#allocation5] sm:$0xf]
        %v480 = vld [vmem:[#allocation5 + $0x4] sm:$0xf]
        %v481 = vld [vmem:[#allocation5 + $0x8] sm:$0xf]
        %v482 = vld [vmem:[#allocation5 + $0xc] sm:$0xf]
        %v483 = vld [vmem:[#allocation5 + $0x10] sm:$0xf]
        %v484 = vld [vmem:[#allocation5 + $0x14] sm:$0xf]
        %v485 = vld [vmem:[#allocation5 + $0x18] sm:$0xf]
        %v486 = vld [vmem:[#allocation5 + $0x1c] sm:$0xf]
        %v487 = vld [vmem:[#allocation5 + $0x20] sm:$0xf]
        %v488 = vld [vmem:[#allocation5 + $0x24] sm:$0xf]
        %v489 = vld [vmem:[#allocation5 + $0x28] sm:$0xf]
        %v490 = vld [vmem:[#allocation5 + $0x2c] sm:$0xf]
        %v491 = vld [vmem:[#allocation5 + $0x30] sm:$0xf]
        %v492 = vld [vmem:[#allocation5 + $0x34] sm:$0xf]
        %v493 = vld [vmem:[#allocation5 + $0x38] sm:$0xf]
        %v494 = vld [vmem:[#allocation5 + $0x3c] sm:$0xf]
        %v511 = vunpack.c.l.b16 %v479
        %v512 = vunpack.c.l.b16 %v480
        %v513 = vunpack.c.l.b16 %v481
        %v514 = vunpack.c.l.b16 %v482
        %v515 = vunpack.c.l.b16 %v483
        %v516 = vunpack.c.l.b16 %v484
        %v517 = vunpack.c.l.b16 %v485
        %v518 = vunpack.c.l.b16 %v486
        %v519 = vunpack.c.l.b16 %v487
        %v520 = vunpack.c.l.b16 %v488
        %v521 = vunpack.c.l.b16 %v489
        %v522 = vunpack.c.l.b16 %v490
        %v523 = vunpack.c.l.b16 %v491
        %v524 = vunpack.c.l.b16 %v492
        %v525 = vunpack.c.l.b16 %v493
        %v526 = vunpack.c.l.b16 %v494
        %v527 = vpack.c.b16 %v512, %v511
        %v528 = vpack.c.b16 %v514, %v513
        %v529 = vpack.c.b16 %v516, %v515
        %v530 = vpack.c.b16 %v518, %v517
        %v531 = vpack.c.b16 %v520, %v519
        %v532 = vpack.c.b16 %v522, %v521
        %v533 = vpack.c.b16 %v524, %v523
        %v534 = vpack.c.b16 %v526, %v525
        %543 = vmatprep.subr.bf16.mxu0 0
        %544 = vmatpush1.bf16.msra.mxu0 %v527
        %545 = vmatprep.subr.bf16.mxu0 0
        %546 = vmatpush1.bf16.msra.mxu0 %v528
        %547 = vmatprep.subr.bf16.mxu0 0
        %548 = vmatpush1.bf16.msra.mxu0 %v529
        %549 = vmatprep.subr.bf16.mxu0 0
        %550 = vmatpush1.bf16.msra.mxu0 %v530
        %551 = vmatprep.subr.bf16.mxu0 0
        %552 = vmatpush1.bf16.msra.mxu0 %v531
        %553 = vmatprep.subr.bf16.mxu0 0
        %554 = vmatpush1.bf16.msra.mxu0 %v532
        %555 = vmatprep.subr.bf16.mxu0 0
        %556 = vmatpush1.bf16.msra.mxu0 %v533
        %557 = vmatprep.subr.bf16.mxu0 0
        %558 = vmatpush1.bf16.msra.mxu0 %v534
        %559 = vmatprep.subr.bf16.mxu0 0
        %560 = vmatpush1.bf16.msra.mxu0 0
        %561 = vmatprep.subr.bf16.mxu0 0
        %562 = vmatpush1.bf16.msra.mxu0 0
        %563 = vmatprep.subr.bf16.mxu0 0
        %564 = vmatpush1.bf16.msra.mxu0 0
        %565 = vmatprep.subr.bf16.mxu0 0
        %566 = vmatpush1.bf16.msra.mxu0 0
        %567 = vmatprep.subr.bf16.mxu0 0
        %568 = vmatpush1.bf16.msra.mxu0 0
        %569 = vmatprep.subr.bf16.mxu0 0
        %570 = vmatpush1.bf16.msra.mxu0 0
        %571 = vmatprep.subr.bf16.mxu0 0
        %572 = vmatpush1.bf16.msra.mxu0 0
        %573 = vmatprep.subr.bf16.mxu0 0
        %574 = vmatpush1.bf16.msra.mxu0 0
        %575 = vmatprep.mubr.bf16.mxu0 0
        %576 = vmatmul.mubr.bf16.gmra.mrb[0].mxu0 %v229
        %v577 = vpop.f32.mrb[0].mxu0
        %v578 = vadd.f32 0.0, %v577
        %v579 = vpop.f32.mrb[0].mxu0
        %v580 = vpop.f32.mrb[0].mxu0
        %v581 = vpop.f32.mrb[0].mxu0
        %582 = vdwg.mxu0
        %v599 = vunpack.c.l.b16 %v463
        %v600 = vunpack.c.l.b16 %v464
        %v601 = vunpack.c.l.b16 %v465
        %v602 = vunpack.c.l.b16 %v466
        %v603 = vunpack.c.l.b16 %v467
        %v604 = vunpack.c.l.b16 %v468
        %v605 = vunpack.c.l.b16 %v469
        %v606 = vunpack.c.l.b16 %v470
        %v607 = vunpack.c.l.b16 %v471
        %v608 = vunpack.c.l.b16 %v472
        %v609 = vunpack.c.l.b16 %v473
        %v610 = vunpack.c.l.b16 %v474
        %v611 = vunpack.c.l.b16 %v475
        %v612 = vunpack.c.l.b16 %v476
        %v613 = vunpack.c.l.b16 %v477
        %v614 = vunpack.c.l.b16 %v478
        %v615 = vpack.c.b16 %v600, %v599
        %v616 = vpack.c.b16 %v602, %v601
        %v617 = vpack.c.b16 %v604, %v603
        %v618 = vpack.c.b16 %v606, %v605
        %v619 = vpack.c.b16 %v608, %v607
        %v620 = vpack.c.b16 %v610, %v609
        %v621 = vpack.c.b16 %v612, %v611
        %v622 = vpack.c.b16 %v614, %v613
        %631 = vmatprep.subr.bf16.mxu0 0
        %632 = vmatpush1.bf16.msra.mxu0 %v615
        %633 = vmatprep.subr.bf16.mxu0 0
        %634 = vmatpush1.bf16.msra.mxu0 %v616
        %635 = vmatprep.subr.bf16.mxu0 0
        %636 = vmatpush1.bf16.msra.mxu0 %v617
        %637 = vmatprep.subr.bf16.mxu0 0
        %638 = vmatpush1.bf16.msra.mxu0 %v618
        %639 = vmatprep.subr.bf16.mxu0 0
        %640 = vmatpush1.bf16.msra.mxu0 %v619
        %641 = vmatprep.subr.bf16.mxu0 0
        %642 = vmatpush1.bf16.msra.mxu0 %v620
        %643 = vmatprep.subr.bf16.mxu0 0
        %644 = vmatpush1.bf16.msra.mxu0 %v621
        %645 = vmatprep.subr.bf16.mxu0 0
        %646 = vmatpush1.bf16.msra.mxu0 %v622
        %647 = vmatprep.subr.bf16.mxu0 0
        %648 = vmatpush1.bf16.msra.mxu0 0
        %649 = vmatprep.subr.bf16.mxu0 0
        %650 = vmatpush1.bf16.msra.mxu0 0
        %651 = vmatprep.subr.bf16.mxu0 0
        %652 = vmatpush1.bf16.msra.mxu0 0
        %653 = vmatprep.subr.bf16.mxu0 0
        %654 = vmatpush1.bf16.msra.mxu0 0
        %655 = vmatprep.subr.bf16.mxu0 0
        %656 = vmatpush1.bf16.msra.mxu0 0
        %657 = vmatprep.subr.bf16.mxu0 0
        %658 = vmatpush1.bf16.msra.mxu0 0
        %659 = vmatprep.subr.bf16.mxu0 0
        %660 = vmatpush1.bf16.msra.mxu0 0
        %661 = vmatprep.subr.bf16.mxu0 0
        %662 = vmatpush1.bf16.msra.mxu0 0
        %663 = vmatprep.mubr.bf16.mxu0 0
        %664 = vmatmul.mubr.bf16.gmra.mrb[0].mxu0 %v461
        %v665 = vpop.f32.mrb[0].mxu0
        %v666 = vadd.f32 %v578, %v665
        %v667 = vpop.f32.mrb[0].mxu0
        %v668 = vpop.f32.mrb[0].mxu0
        %v669 = vpop.f32.mrb[0].mxu0
        %670 = vdwg.mxu0
        %s671 = scalar_lea.vmem %s3, 2
        %v672 = vld [vmem:[%s671] sm:$0x1]
        %v674 = vlaneseq
        %v675 = vshrl.u32 %v674, 7
        %v676 = vsub.s32 0, %v675
        %v677 = vrot.slane %v672, %v676
        %v679 = vadd.f32 %v666, %v677
        %vm680 = vcmp.gt.f32.partialorder %v679, 0.0
        %v681 = vmul.f32 %v679, 0.01
        %v682 = vsel %vm680, %v679, %v681
        %v683 = vpack.c.bf16 %v682, %v682
        %s684 = scalar_lea.vmem [#allocation3], 192
        %v685 = vld [vmem:[%s684] sm:$0xf]
        %v686 = vld [vmem:[%s684 + $0x4] sm:$0xf]
        %v687 = vld [vmem:[%s684 + $0x8] sm:$0xf]
        %v688 = vld [vmem:[%s684 + $0xc] sm:$0xf]
        %v689 = vld [vmem:[%s684 + $0x10] sm:$0xf]
        %v690 = vld [vmem:[%s684 + $0x14] sm:$0xf]
        %v691 = vld [vmem:[%s684 + $0x18] sm:$0xf]
        %v692 = vld [vmem:[%s684 + $0x1c] sm:$0xf]
        %v693 = vld [vmem:[%s684 + $0x20] sm:$0xf]
        %v694 = vld [vmem:[%s684 + $0x24] sm:$0xf]
        %v695 = vld [vmem:[%s684 + $0x28] sm:$0xf]
        %v696 = vld [vmem:[%s684 + $0x2c] sm:$0xf]
        %v697 = vld [vmem:[%s684 + $0x30] sm:$0xf]
        %v698 = vld [vmem:[%s684 + $0x34] sm:$0xf]
        %v699 = vld [vmem:[%s684 + $0x38] sm:$0xf]
        %v700 = vld [vmem:[%s684 + $0x3c] sm:$0xf]
        %s701 = scalar_lea.vmem %s3, 3
        %v702 = vld [vmem:[%s701] sm:$0x1]
        %v704 = vlaneseq
        %v705 = vshrl.u32 %v704, 7
        %v706 = vsub.s32 0, %v705
        %v707 = vrot.slane %v702, %v706
        %v725 = vunpack.c.l.b16 %v685
        %v726 = vunpack.c.l.b16 %v686
        %v727 = vunpack.c.l.b16 %v687
        %v728 = vunpack.c.l.b16 %v688
        %v729 = vunpack.c.l.b16 %v689
        %v730 = vunpack.c.l.b16 %v690
        %v731 = vunpack.c.l.b16 %v691
        %v732 = vunpack.c.l.b16 %v692
        %v733 = vunpack.c.l.b16 %v693
        %v734 = vunpack.c.l.b16 %v694
        %v735 = vunpack.c.l.b16 %v695
        %v736 = vunpack.c.l.b16 %v696
        %v737 = vunpack.c.l.b16 %v697
        %v738 = vunpack.c.l.b16 %v698
        %v739 = vunpack.c.l.b16 %v699
        %v740 = vunpack.c.l.b16 %v700
        %v741 = vpack.c.b16 %v726, %v725
        %v742 = vpack.c.b16 %v728, %v727
        %v743 = vpack.c.b16 %v730, %v729
        %v744 = vpack.c.b16 %v732, %v731
        %v745 = vpack.c.b16 %v734, %v733
        %v746 = vpack.c.b16 %v736, %v735
        %v747 = vpack.c.b16 %v738, %v737
        %v748 = vpack.c.b16 %v740, %v739
        %757 = vmatprep.subr.bf16.mxu0 0
        %758 = vmatpush1.bf16.msra.mxu0 %v741
        %759 = vmatprep.subr.bf16.mxu0 0
        %760 = vmatpush1.bf16.msra.mxu0 %v742
        %761 = vmatprep.subr.bf16.mxu0 0
        %762 = vmatpush1.bf16.msra.mxu0 %v743
        %763 = vmatprep.subr.bf16.mxu0 0
        %764 = vmatpush1.bf16.msra.mxu0 %v744
        %765 = vmatprep.subr.bf16.mxu0 0
        %766 = vmatpush1.bf16.msra.mxu0 %v745
        %767 = vmatprep.subr.bf16.mxu0 0
        %768 = vmatpush1.bf16.msra.mxu0 %v746
        %769 = vmatprep.subr.bf16.mxu0 0
        %770 = vmatpush1.bf16.msra.mxu0 %v747
        %771 = vmatprep.subr.bf16.mxu0 0
        %772 = vmatpush1.bf16.msra.mxu0 %v748
        %773 = vmatprep.subr.bf16.mxu0 0
        %774 = vmatpush1.bf16.msra.mxu0 0
        %775 = vmatprep.subr.bf16.mxu0 0
        %776 = vmatpush1.bf16.msra.mxu0 0
        %777 = vmatprep.subr.bf16.mxu0 0
        %778 = vmatpush1.bf16.msra.mxu0 0
        %779 = vmatprep.subr.bf16.mxu0 0
        %780 = vmatpush1.bf16.msra.mxu0 0
        %781 = vmatprep.subr.bf16.mxu0 0
        %782 = vmatpush1.bf16.msra.mxu0 0
        %783 = vmatprep.subr.bf16.mxu0 0
        %784 = vmatpush1.bf16.msra.mxu0 0
        %785 = vmatprep.subr.bf16.mxu0 0
        %786 = vmatpush1.bf16.msra.mxu0 0
        %787 = vmatprep.subr.bf16.mxu0 0
        %788 = vmatpush1.bf16.msra.mxu0 0
        %789 = vmatprep.mubr.bf16.mxu0 0
        %790 = vmatmul.mubr.bf16.gmra.mrb[0].mxu0 %v683
        %v791 = vpop.f32.mrb[0].mxu0
        %v792 = vadd.f32 %v707, %v791
        %v793 = vpop.f32.mrb[0].mxu0
        %v794 = vpop.f32.mrb[0].mxu0
        %v795 = vpop.f32.mrb[0].mxu0
        %796 = vdwg.mxu0
        %797 = vst [vmem:[%s222] sm:$0xff] %v792
        %p798 = scmp.lt.s32.totalorder %s17, 1
        %s799 = scalar_select %p798, %s17, 1
        %s800 = smul.addr %s799, 8
        %s801 = scalar_lea.vmem %s4, %s800
        // Predicated region
        $region45: #{_forward_impl.1} parent=35 // pred_check
          %p802 = pneg %p124
        $region46: #{_forward_impl.1} parent=35 // pred_check_branch
          %804 = sbr.rel (%p802) target = $region48
        $region47: #{_forward_impl.1} parent=35 // pred_region
          _
        $region48: #{_forward_impl.1} parent=35 // pred_fallthru
          _
      $region36: #{_forward_impl.1} parent=5 // pred_fallthru
        _
      %p805 = scmp.le.s32.totalorder 2, %s12
      // Predicated region
      $region49: #{_forward_impl.1} parent=5 // pred_check
        %p806 = pneg %p805
      $region50: #{_forward_impl.1} parent=5 // pred_check_branch
        %808 = sbr.rel (%p806) target = $region52
      $region51: #{_forward_impl.1} parent=5 // pred_region
        %s809 = ssub.s32 %s12, 2
        // Predicated region
        $region53: #{_forward_impl.1} parent=51 // pred_check
          %p810 = pneg %p130
        $region54: #{_forward_impl.1} parent=51 // pred_check_branch
          %812 = sbr.rel (%p810) target = $region56
        $region55: #{_forward_impl.1} parent=51 // pred_region
          %p813 = scmp.lt.s32.totalorder %s18, 1
          %s814 = scalar_select %p813, %s18, 1
          %s815 = smul.addr %s814, 8
          %s816 = scalar_lea.vmem %s4, %s815
        $region56: #{_forward_impl.1} parent=51 // pred_fallthru
          _
      $region52: #{_forward_impl.1} parent=5 // pred_fallthru
        _
    $region6: #{_forward_impl.1} parent=1 // loop_footer
      %s16 = sadd.s32 1, %s12
    $region7: #{_forward_impl.1} parent=1 // loop_footer_branch
      %11 = sbr.rel target = $region3
    $region8: #{_forward_impl.1} parent=1 // loop_exit
      _
    %817 = vsyncpa [#allocation4], 1
    %s818 = scalar_lea.sflag [#allocation4], 1
    %819 = vsyncpa %s818, 1
    %820 = vsyncpa [#allocation6], 1

</llo_original>
